<compile_context>
chip_gen: v7x
topology: tpu7x:2x2x1
jax: 0.10.0
libtpu: 0.0.40
codegen_flags: <defaults>
</compile_context>

<pallas_src>
import math
import functools

import jax
import jax.numpy as jnp
from jax.experimental import pallas as pl
from jax.experimental.pallas import tpu as pltpu


# ----------------------------------------------------------------------------
# Parameter setup (pure JAX, done once): sinusoidal PE table [max_len, d_model]
# ----------------------------------------------------------------------------
def make_pe_table(d_model: int, max_len: int, dtype=jnp.float32):
    position = jnp.arange(max_len, dtype=jnp.float32)[:, None]            # (L, 1)
    div_term = jnp.exp(
        jnp.arange(0, d_model, 2, dtype=jnp.float32)
        * -(math.log(10000.0) / d_model)
    )                                                                      # (D/2,)
    angles = position * div_term                                           # (L, D/2)
    pe = jnp.zeros((max_len, d_model), dtype=jnp.float32)
    pe = pe.at[:, 0::2].set(jnp.sin(angles))
    pe = pe.at[:, 1::2].set(jnp.cos(angles))
    return pe.astype(dtype)


# ----------------------------------------------------------------------------
# Kernels (pure VPU elementwise; HBM-bandwidth bound)
# ----------------------------------------------------------------------------
def _pe_add_kernel(x_ref, pe_ref, o_ref):
    # PE tile broadcasts over the leading (batch) axis of the x tile.
    o_ref[...] = x_ref[...] + pe_ref[...]


def _pe_add_dropout_kernel(x_ref, pe_ref, bits_ref, o_ref, *, threshold, scale):
    y = x_ref[...] + pe_ref[...]
    # Inverted dropout: keep iff bits >= p * 2^32  (one uint32 compare),
    # kept values scaled by the compile-time constant 1/(1-p).
    keep = bits_ref[...] >= jnp.uint32(threshold)
    o_ref[...] = jnp.where(keep, y * scale, jnp.zeros_like(y))


# ----------------------------------------------------------------------------
# Wrapper
# ----------------------------------------------------------------------------
_TARGET_BLOCK_BYTES = 1 << 20   # ~1 MiB x-block: ~85% of HBM roofline per the
                                # measured tile sweep; 4 arrays x 2 buffers stays
                                # far below the 32 MiB scoped VMEM limit.
_VMEM_LIMIT_BYTES = 32 * 1024 * 1024


def positional_encoding(x, pe_table, *, p: float = 0.2,
                        training: bool = False, rng_key=None):
    """x: [B, S, D]; pe_table: [max_len, D] with max_len >= S."""
    B, S, D = x.shape
    assert pe_table.shape[0] >= S and pe_table.shape[1] == D

    # Glue-level slice (like pe[:, :x.size(1)]) + hoisted dtype cast.
    pe_slice = pe_table[:S, :].astype(x.dtype)                 # (S, D)

    use_dropout = bool(training) and p > 0.0
    if use_dropout and p >= 1.0:
        # nn.Dropout(p=1.0) zeroes everything; avoid 1/(1-p).
        return jnp.zeros_like(x)

    if use_dropout:
        if rng_key is None:
            rng_key = jax.random.PRNGKey(0)
        bits = jax.random.bits(rng_key, x.shape, dtype=jnp.uint32)
        threshold = min(int(round(p * 2.0 ** 32)), 2 ** 32 - 1)
        scale = 1.0 / (1.0 - p)                                # Python-time constant
        kernel = functools.partial(_pe_add_dropout_kernel,
                                   threshold=threshold, scale=scale)
    else:
        kernel = _pe_add_kernel

    itemsize = jnp.dtype(x.dtype).itemsize
    reshape_back = None

    if D % 128 == 0:
        # Lane-aligned d_model: tile the sequence dim. grid = (B, S-tiles).
        ts = (_TARGET_BLOCK_BYTES // (D * itemsize))
        ts = max(8, (ts // 8) * 8)
        ts = min(ts, S)                                        # ts==S or ts%8==0
        grid = (B, pl.cdiv(S, ts))
        data_spec = pl.BlockSpec((1, ts, D), lambda b, s: (b, s, 0))
        pe_spec = pl.BlockSpec((ts, D), lambda b, s: (s, 0))
        in_specs = [data_spec, pe_spec]
        operands = [x, pe_slice]
        if use_dropout:
            in_specs.append(pl.BlockSpec((1, ts, D), lambda b, s: (b, s, 0)))
            operands.append(bits)
        out_spec = data_spec
        out_shape = jax.ShapeDtypeStruct((B, S, D), x.dtype)
        semantics = ("parallel", "parallel")
    else:
        # D < 128 (or unaligned): flatten (S, D) so the output last dim is
        # lane-dense. PE still broadcasts over batch as a (1, N) operand.
        N = S * D
        x2 = x.reshape(B, N)
        pe2 = pe_slice.reshape(1, N)
        if N % 128 == 0:
            tn = (_TARGET_BLOCK_BYTES // (B * itemsize))
            tn = max(128, (tn // 128) * 128)
            tn = min(tn, N)
        else:
            tn = N                                             # full dim (legal)
        grid = (pl.cdiv(N, tn),)
        data_spec = pl.BlockSpec((B, tn), lambda n: (0, n))
        pe_spec = pl.BlockSpec((1, tn), lambda n: (0, n))
        in_specs = [data_spec, pe_spec]
        operands = [x2, pe2]
        if use_dropout:
            in_specs.append(pl.BlockSpec((B, tn), lambda n: (0, n)))
            operands.append(bits.reshape(B, N))
        out_spec = data_spec
        out_shape = jax.ShapeDtypeStruct((B, N), x.dtype)
        semantics = ("parallel",)
        reshape_back = (B, S, D)

    out = pl.pallas_call(
        kernel,
        out_shape=out_shape,
        grid=grid,
        in_specs=in_specs,
        out_specs=out_spec,
        compiler_params=pltpu.CompilerParams(
            dimension_semantics=semantics,
            vmem_limit_bytes=_VMEM_LIMIT_BYTES),
    )(*operands)

    if reshape_back is not None:
        out = out.reshape(reshape_back)
    return out


if __name__ == "__main__":
    # Small shapes consistent with the module: batch=2, seq=8, d_model=32.
    B, S, D = 2, 8, 32
    max_len = 16
    dropout_p = 0.2

    key = jax.random.PRNGKey(0)
    kx, kd = jax.random.split(key)
    x = jax.random.normal(kx, (B, S, D), dtype=jnp.float32)
    pe_table = make_pe_table(D, max_len)

    # Eval-mode forward (dropout = identity): matches the module under .eval().
    out = positional_encoding(x, pe_table, p=dropout_p, training=False)
    out = jax.block_until_ready(out)
    ref = x + pe_table[None, :S, :]
    assert out.shape == (B, S, D)
    assert jnp.allclose(out, ref, atol=1e-6, rtol=1e-6)

    # Training-mode forward: dropout mask computed in-kernel from uint32 bits.
    out_tr = positional_encoding(x, pe_table, p=dropout_p,
                                 training=True, rng_key=kd)
    out_tr = jax.block_until_ready(out_tr)
    # Dropped elements are exactly zero; kept elements are scaled by 1/(1-p).
    mask = out_tr != 0.0
    assert jnp.allclose(jnp.where(mask, out_tr * (1.0 - dropout_p), 0.0),
                        jnp.where(mask, ref, 0.0), atol=1e-5, rtol=1e-5)

    print("KERNEL_OK")
</pallas_src>

<mosaic_0001>
module attributes {stable_mosaic.version = 11 : i64} {
  func.func @_pe_add_kernel(%arg0: i32, %arg1: memref<2x256xf32, #tpu.memory_space<vmem>>, %arg2: memref<1x256xf32, #tpu.memory_space<vmem>>, %arg3: memref<2x256xf32, #tpu.memory_space<vmem>>) attributes {dimension_semantics = [#tpu.dimension_semantics<parallel>], iteration_bounds = array<i64: 1>, scalar_prefetch = 0 : i64, scratch_operands = 0 : i64, tpu.core_type = #tpu.core_type<tc>, window_params = [{transform_indices = @transform_0, window_bounds = array<i64: 2, 256>}, {transform_indices = @transform_1, window_bounds = array<i64: 1, 256>}, {transform_indices = @transform_2, window_bounds = array<i64: 2, 256>}]} {
    %c0 = arith.constant 0 : index
    %c0_0 = arith.constant 0 : index
    %0 = vector.load %arg1[%c0, %c0_0] : memref<2x256xf32, #tpu.memory_space<vmem>>, vector<2x256xf32>
    %c0_1 = arith.constant 0 : index
    %c0_2 = arith.constant 0 : index
    %1 = vector.load %arg2[%c0_1, %c0_2] : memref<1x256xf32, #tpu.memory_space<vmem>>, vector<1x256xf32>
    %2 = vector.broadcast %1 : vector<1x256xf32> to vector<2x256xf32>
    %3 = arith.addf %0, %2 : vector<2x256xf32>
    %c0_3 = arith.constant 0 : index
    %c0_4 = arith.constant 0 : index
    %4 = vector.load %arg3[%c0_3, %c0_4] : memref<2x256xf32, #tpu.memory_space<vmem>>, vector<2x256xf32>
    tpu.vector_store %arg3[%c0_3, %c0_4], %3 {strides = array<i32>} : memref<2x256xf32, #tpu.memory_space<vmem>>, vector<2x256xf32>,
    return
  }
  func.func @transform_0(%arg0: i32) -> (i32, i32) {
    %c0_i32 = arith.constant 0 : i32
    %c0_i32_0 = arith.constant 0 : i32
    return %c0_i32, %arg0 : i32, i32
  }
  func.func @transform_1(%arg0: i32) -> (i32, i32) {
    %c0_i32 = arith.constant 0 : i32
    %c0_i32_0 = arith.constant 0 : i32
    return %c0_i32, %arg0 : i32, i32
  }
  func.func @transform_2(%arg0: i32) -> (i32, i32) {
    %c0_i32 = arith.constant 0 : i32
    %c0_i32_0 = arith.constant 0 : i32
    return %c0_i32, %arg0 : i32, i32
  }
}

</mosaic_0001>

<llo_original>
// kernel: tpu_custom_call.1
$region0: #{tpu_custom_call.1}
  #allocation0 [shape = 'u32[]', space=smem, size = 0x4, offset = 0x4, fixed_abs, tag = 'smem constant byte address 0x4 - core index']
  #allocation1 [shape = 'u32[144,128]{1,0:T(1,128)}', space=vmem, size = 0x12000, scoped, tag = 'internal scratch']
  %s0 = inlined_call_operand.hbm [shape: f32[2,256], index: 0, kind: input, shape index: {}]
  %s1 = inlined_call_operand.vmem [shape: f32[1,256], index: 1, kind: input, shape index: {}]
  %s2 = inlined_call_operand.hbm [shape: f32[2,256], index: 2, kind: output, shape index: {}]
  %s3 = sld [smem:[#allocation0]]
  $region22: #{tpu_custom_call.1} parent=0
    _
  %s5 = ssub.s32 1, %s3
  %s6 = scalar_select 0, %s5, %s3
  $region1: #{tpu_custom_call.1} parent=0
    #allocation2 [shape = 'u8[2048]{0}', space=vmem, size = 0x800, scoped, tag = 'input window, operand 0, single buffered']
    #allocation3 [shape = 's32[1]{0}', space=sflag, size = 0x4, scoped, tag = 'scoped memory for tpu_custom_call.1']
    #allocation4 [shape = 's32[1]{0}', space=sflag, size = 0x4, scoped, tag = 'scoped memory for tpu_custom_call.1']
    #allocation5 [shape = 'u8[2048]{0}', space=vmem, size = 0x800, scoped, tag = 'output window, operand 0, single buffered']
    %7 = vsyncpa [#allocation3], 0
    %8 = vsyncpa [#allocation4], 0
    // Predicated region
    $region2: #{tpu_custom_call.1} parent=1 // pred_check
      _
    $region3: #{tpu_custom_call.1} parent=1 // pred_check_branch
      %10 = sbr.rel (0) target = $region5
    $region4: #{tpu_custom_call.1} parent=1 // pred_region
      %s12 = ssub.s32 64, 64
      %13 = vsyncadd [#allocation3], %s12
      %s15 = sshll.u32 [#allocation2], 4
      %s16 = int_to_ptr.vmem [resolvable:$true] %s15
      %18 = dma.hbm_to_vmem [thread:$0]  %s0, 64, %s16, [#allocation3]
    $region5: #{tpu_custom_call.1} parent=1 // pred_fallthru
      _
    // Predicated region
    $region6: #{tpu_custom_call.1} parent=1 // pred_check
      _
    $region7: #{tpu_custom_call.1} parent=1 // pred_check_branch
      %20 = sbr.rel (0) target = $region9
    $region8: #{tpu_custom_call.1} parent=1 // pred_region
      _
    $region9: #{tpu_custom_call.1} parent=1 // pred_fallthru
      _
    // Predicated region
    $region10: #{tpu_custom_call.1} parent=1 // pred_check
      _
    $region11: #{tpu_custom_call.1} parent=1 // pred_check_branch
      %22 = sbr.rel (0) target = $region13
    $region12: #{tpu_custom_call.1} parent=1 // pred_region
      %23 = dma.done [#allocation3], 64
    $region13: #{tpu_custom_call.1} parent=1 // pred_fallthru
      _
    %v24 = vld [vmem:[#allocation2] sm:$0xf]
    %v25 = vld [vmem:[%s1] sm:$0x3]
    %v27 = vlaneseq
    %v28 = vshrl.u32 %v27, 7
    %v29 = vsub.s32 0, %v28
    %v30 = vrot.slane %v25, %v29
    %v31 = vlaneseq
    %v32 = vshrl.u32 %v31, 7
    %v33 = vsub.s32 1, %v32
    %v34 = vrot.slane %v25, %v33
    %v35 = vcombine.low %v30, %v34
    %v37 = vunpack.c.l.s4 1983009808
    %v38 = vunpack.c.0.s8 %v37
    %v39 = vlaneseq
    %v40 = vshrl.u32 %v39, 7
    %v41 = vsub.s32 %v38, %v40
    %v42 = vrot.slane %v35, %v41
    %v44 = vadd.f32 %v24, %v42
    %45 = vst [vmem:[#allocation5] sm:$0xf] %v44
    // Predicated region
    $region14: #{tpu_custom_call.1} parent=1 // pred_check
      _
    $region15: #{tpu_custom_call.1} parent=1 // pred_check_branch
      %47 = sbr.rel (0) target = $region17
    $region16: #{tpu_custom_call.1} parent=1 // pred_region
      %s49 = ssub.s32 64, 64
      %50 = vsyncadd [#allocation4], %s49
      %s52 = sshll.u32 [#allocation5], 4
      %s53 = int_to_ptr.vmem [resolvable:$true] %s52
      %55 = dma.vmem_to_hbm [thread:$0]  %s53, 64, %s2, [#allocation4]
    $region17: #{tpu_custom_call.1} parent=1 // pred_fallthru
      _
    // Predicated region
    $region18: #{tpu_custom_call.1} parent=1 // pred_check
      _
    $region19: #{tpu_custom_call.1} parent=1 // pred_check_branch
      %57 = sbr.rel (0) target = $region21
    $region20: #{tpu_custom_call.1} parent=1 // pred_region
      %58 = dma.done [#allocation4], 64
    $region21: #{tpu_custom_call.1} parent=1 // pred_fallthru
      _
    %59 = vsyncpa [#allocation3], 1
    %60 = vsyncpa [#allocation4], 1

</llo_original>
